<compile_context>
chip_gen: v5e
topology: v5e:2x2
jax: 0.10.0
libtpu: 0.0.40
codegen_flags: <defaults>
</compile_context>

<pallas_src>
import jax
import jax.numpy as jnp
import numpy as np
from jax.experimental import pallas as pl
from jax.experimental.pallas import tpu as pltpu

LANES = 128
SUBLANES = 8


def qgn_kernel(s_ref, x_ref, o_ref):
    # s_ref: SMEM (7,) scalars:
    #   [w2, w3, w4 + w6, w5, w7, 0.5*cos(w8), 0.5*sin(w8)]
    # x_ref: VMEM (3, rt, 128) feature planes (x1, x2, x3), batch lane-dense
    # o_ref: VMEM (rt, 128)
    x1 = x_ref[0]
    x2 = x_ref[1]
    x3 = x_ref[2]

    th1 = s_ref[0] + x1 * s_ref[1]                    # w2 + x1*w3
    t = s_ref[2] + x2 * s_ref[3] + x3 * s_ref[4]      # om1 + phi2

    # p0 = 0.5 + 0.5*cos(th2)*cos(th1) - 0.5*sin(th2)*sin(th1)*cos(om1+phi2)
    o_ref[...] = (0.5
                  + s_ref[5] * jnp.cos(th1)
                  - s_ref[6] * (jnp.sin(th1) * jnp.cos(t)))


def qgn_forward(input_features, weights, *, block_rows=512):
    """input_features: (B, 4) float32, weights: (12,) float32 -> (B, 1) float32."""
    assert block_rows % SUBLANES == 0
    x = jnp.asarray(input_features, jnp.float32)
    w = jnp.asarray(weights, jnp.float32)
    B = x.shape[0]

    # Batch tiling: lane-dense rows of 128; rows padded up to a multiple of rt.
    r_needed = -(-B // LANES)                                   # ceil(B / 128)
    rt = min(block_rows, max(SUBLANES, -(-r_needed // SUBLANES) * SUBLANES))
    R = -(-r_needed // rt) * rt
    Bp = R * LANES

    # Only x1, x2, x3 feed the measured probability.  Single fused
    # slice+transpose+pad relayout; the reshape to (3, R, 128) is free.
    xs = jnp.pad(x[:, 1:4].T, ((0, 0), (0, Bp - B))).reshape(3, R, LANES)

    # Batch-independent scalars (second-Rot trig hoisted out of the kernel).
    scal = jnp.stack([w[2], w[3], w[4] + w[6], w[5], w[7],
                      0.5 * jnp.cos(w[8]), 0.5 * jnp.sin(w[8])])

    out = pl.pallas_call(
        qgn_kernel,
        out_shape=jax.ShapeDtypeStruct((R, LANES), jnp.float32),
        grid=(R // rt,),
        in_specs=[
            pl.BlockSpec(memory_space=pltpu.MemorySpace.SMEM),          # scalars
            pl.BlockSpec((3, rt, LANES), lambda i: (0, i, 0)),          # features
        ],
        out_specs=pl.BlockSpec((rt, LANES), lambda i: (i, 0)),
        compiler_params=pltpu.CompilerParams(
            dimension_semantics=("parallel",)),
    )(scal, xs)

    # Free reshapes + contiguous trim back to the PyTorch (B, 1) convention.
    return out.reshape(Bp)[:B].reshape(B, 1)


def qgn_reference(x, w):
    """Pure-JAX reference: full 2x2 complex simulation of the same circuit."""
    x = jnp.asarray(x, jnp.float32)
    w = jnp.asarray(w, jnp.float32)
    phi1 = w[0] + x[:, 0] * w[1]
    th1 = w[2] + x[:, 1] * w[3]
    om1 = w[4] + x[:, 2] * w[5]
    phi2 = w[6] + x[:, 3] * w[7]
    th2 = w[8] + 0.0 * w[9]
    om2 = w[10] + 0.0 * w[11]

    def rot(phi, th, om):
        c = jnp.cos(th / 2)
        s = jnp.sin(th / 2)
        return jnp.stack(
            [
                jnp.stack([jnp.exp(-1j * (phi + om) / 2) * c,
                           -jnp.exp(1j * (phi - om) / 2) * s], axis=-1),
                jnp.stack([jnp.exp(-1j * (phi - om) / 2) * s,
                           jnp.exp(1j * (phi + om) / 2) * c], axis=-1),
            ],
            axis=-2,
        )

    psi0 = jnp.array([1.0 + 0j, 0.0 + 0j])
    psi = jnp.einsum("bij,j->bi", rot(phi1, th1, om1), psi0)
    psi = jnp.einsum("bij,bj->bi", rot(phi2, th2, om2), psi)
    return (jnp.abs(psi[:, 0]) ** 2)[:, None].astype(jnp.float32)


if __name__ == "__main__":
    key = jax.random.PRNGKey(0)
    k_x, k_w, k_x2 = jax.random.split(key, 3)

    # Small batch of 4-feature inputs (the circuit consumes 4 features).
    B = 8
    x = jax.random.uniform(k_x, (B, 4), dtype=jnp.float32, minval=-1.0, maxval=1.0)
    # TorchLayer default init: uniform in [0, 2*pi) for the 12 circuit weights.
    weights = jax.random.uniform(k_w, (12,), dtype=jnp.float32,
                                 minval=0.0, maxval=2.0 * np.pi)

    out = jax.block_until_ready(qgn_forward(x, weights))
    ref = jax.block_until_ready(qgn_reference(x, weights))
    assert out.shape == (B, 1) and out.dtype == jnp.float32
    assert np.allclose(np.asarray(out), np.asarray(ref), atol=1e-5), (out, ref)

    # Also exercise the multi-block pipelined "parallel" grid path + tail trim.
    B2 = 3000
    x2 = jax.random.uniform(k_x2, (B2, 4), dtype=jnp.float32, minval=-1.0, maxval=1.0)
    out2 = jax.block_until_ready(qgn_forward(x2, weights, block_rows=8))
    ref2 = jax.block_until_ready(qgn_reference(x2, weights))
    assert out2.shape == (B2, 1)
    assert np.allclose(np.asarray(out2), np.asarray(ref2), atol=1e-5)

    print("KERNEL_OK")
</pallas_src>

<mosaic_0001>
module attributes {stable_mosaic.version = 11 : i64} {
  func.func @qgn_kernel(%arg0: i32, %arg1: memref<7xf32, #tpu.memory_space<smem>>, %arg2: memref<3x8x128xf32, #tpu.memory_space<vmem>>, %arg3: memref<8x128xf32, #tpu.memory_space<vmem>>) attributes {dimension_semantics = [#tpu.dimension_semantics<parallel>], iteration_bounds = array<i64: 1>, scalar_prefetch = 0 : i64, scratch_operands = 0 : i64, tpu.core_type = #tpu.core_type<tc>, window_params = [{transform_indices = @transform_0, window_bounds = array<i64: 7>}, {transform_indices = @transform_1, window_bounds = array<i64: 3, 8, 128>}, {transform_indices = @transform_2, window_bounds = array<i64: 8, 128>}]} {
    %c0 = arith.constant 0 : index
    %c0_0 = arith.constant 0 : index
    %c0_1 = arith.constant 0 : index
    %0 = vector.load %arg2[%c0, %c0_0, %c0_1] : memref<3x8x128xf32, #tpu.memory_space<vmem>>, vector<1x8x128xf32>
    %1 = vector.shape_cast %0 : vector<1x8x128xf32> to vector<8x128xf32>
    %c1 = arith.constant 1 : index
    %c0_2 = arith.constant 0 : index
    %c0_3 = arith.constant 0 : index
    %2 = vector.load %arg2[%c1, %c0_2, %c0_3] : memref<3x8x128xf32, #tpu.memory_space<vmem>>, vector<1x8x128xf32>
    %3 = vector.shape_cast %2 : vector<1x8x128xf32> to vector<8x128xf32>
    %c2 = arith.constant 2 : index
    %c0_4 = arith.constant 0 : index
    %c0_5 = arith.constant 0 : index
    %4 = vector.load %arg2[%c2, %c0_4, %c0_5] : memref<3x8x128xf32, #tpu.memory_space<vmem>>, vector<1x8x128xf32>
    %5 = vector.shape_cast %4 : vector<1x8x128xf32> to vector<8x128xf32>
    %c0_6 = arith.constant 0 : index
    %6 = memref.load %arg1[%c0_6] : memref<7xf32, #tpu.memory_space<smem>>
    %c1_7 = arith.constant 1 : index
    %7 = memref.load %arg1[%c1_7] : memref<7xf32, #tpu.memory_space<smem>>
    %8 = vector.broadcast %7 : f32 to vector<8x128xf32>
    %9 = arith.mulf %1, %8 : vector<8x128xf32>
    %10 = vector.broadcast %6 : f32 to vector<8x128xf32>
    %11 = arith.addf %10, %9 : vector<8x128xf32>
    %c2_8 = arith.constant 2 : index
    %12 = memref.load %arg1[%c2_8] : memref<7xf32, #tpu.memory_space<smem>>
    %c3 = arith.constant 3 : index
    %13 = memref.load %arg1[%c3] : memref<7xf32, #tpu.memory_space<smem>>
    %14 = vector.broadcast %13 : f32 to vector<8x128xf32>
    %15 = arith.mulf %3, %14 : vector<8x128xf32>
    %16 = vector.broadcast %12 : f32 to vector<8x128xf32>
    %17 = arith.addf %16, %15 : vector<8x128xf32>
    %c4 = arith.constant 4 : index
    %18 = memref.load %arg1[%c4] : memref<7xf32, #tpu.memory_space<smem>>
    %19 = vector.broadcast %18 : f32 to vector<8x128xf32>
    %20 = arith.mulf %5, %19 : vector<8x128xf32>
    %21 = arith.addf %17, %20 : vector<8x128xf32>
    %c5 = arith.constant 5 : index
    %22 = memref.load %arg1[%c5] : memref<7xf32, #tpu.memory_space<smem>>
    %23 = math.cos %11 : vector<8x128xf32>
    %24 = vector.broadcast %22 : f32 to vector<8x128xf32>
    %25 = arith.mulf %24, %23 : vector<8x128xf32>
    %cst = arith.constant 5.000000e-01 : f32
    %26 = vector.broadcast %cst : f32 to vector<8x128xf32>
    %27 = arith.addf %26, %25 : vector<8x128xf32>
    %c6 = arith.constant 6 : index
    %28 = memref.load %arg1[%c6] : memref<7xf32, #tpu.memory_space<smem>>
    %29 = math.sin %11 : vector<8x128xf32>
    %30 = math.cos %21 : vector<8x128xf32>
    %31 = arith.mulf %29, %30 : vector<8x128xf32>
    %32 = vector.broadcast %28 : f32 to vector<8x128xf32>
    %33 = arith.mulf %32, %31 : vector<8x128xf32>
    %34 = arith.subf %27, %33 : vector<8x128xf32>
    %c0_9 = arith.constant 0 : index
    %c0_10 = arith.constant 0 : index
    %35 = vector.load %arg3[%c0_9, %c0_10] : memref<8x128xf32, #tpu.memory_space<vmem>>, vector<8x128xf32>
    tpu.vector_store %arg3[%c0_9, %c0_10], %34 {strides = array<i32>} : memref<8x128xf32, #tpu.memory_space<vmem>>, vector<8x128xf32>,
    return
  }
  func.func @transform_0(%arg0: i32) -> i32 {
    %c0_i32 = arith.constant 0 : i32
    %c0_i32_0 = arith.constant 0 : i32
    return %c0_i32 : i32
  }
  func.func @transform_1(%arg0: i32) -> (i32, i32, i32) {
    %c0_i32 = arith.constant 0 : i32
    %c0_i32_0 = arith.constant 0 : i32
    %c0_i32_1 = arith.constant 0 : i32
    return %c0_i32, %arg0, %c0_i32_0 : i32, i32, i32
  }
  func.func @transform_2(%arg0: i32) -> (i32, i32) {
    %c0_i32 = arith.constant 0 : i32
    %c0_i32_0 = arith.constant 0 : i32
    return %arg0, %c0_i32 : i32, i32
  }
}

</mosaic_0001>

<llo_original>
// kernel: tpu_custom_call.1
$region0: #{tpu_custom_call.1}
  #allocation0 [shape = 'u32[]', space=smem, size = 0x4, offset = 0x4, fixed_abs, tag = 'smem constant byte address 0x4 - core index']
  #allocation1 [shape = 'u32[72,128]{1,0:T(1,128)}', space=vmem, size = 0x9000, scoped, tag = 'internal scratch']
  %s0 = inlined_call_operand.hbm [shape: f32[7], index: 0, kind: input, shape index: {}]
  %s1 = inlined_call_operand.hbm [shape: f32[3,8,128], index: 1, kind: input, shape index: {}]
  %s2 = inlined_call_operand.hbm [shape: f32[8,128], index: 2, kind: output, shape index: {}]
  %s3 = sld [smem:[#allocation0]]
  $region26: #{tpu_custom_call.1} parent=0
    _
  %s5 = ssub.s32 1, %s3
  %s6 = scalar_select 0, %s5, %s3
  $region1: #{tpu_custom_call.1} parent=0
    #allocation2 [shape = 'u8[512]{0}', space=smem, size = 0x200, scoped, tag = 'input window, operand 0, single buffered']
    #allocation3 [shape = 's32[1]{0}', space=sflag, size = 0x4, scoped, tag = 'scoped memory for tpu_custom_call.1']
    #allocation4 [shape = 's32[1]{0}', space=sflag, size = 0x4, scoped, tag = 'scoped memory for tpu_custom_call.1']
    #allocation5 [shape = 's32[1]{0}', space=sflag, size = 0x4, scoped, tag = 'scoped memory for tpu_custom_call.1']
    #allocation6 [shape = 'u8[12288]{0}', space=vmem, size = 0x3000, scoped, tag = 'input window, operand 1, single buffered']
    #allocation7 [shape = 'u8[4096]{0}', space=vmem, size = 0x1000, scoped, tag = 'output window, operand 0, single buffered']
    %7 = vsyncpa [#allocation5], 0
    %8 = vsyncpa [#allocation3], 0
    %9 = vsyncpa [#allocation4], 0
    // Predicated region
    $region2: #{tpu_custom_call.1} parent=1 // pred_check
      _
    $region3: #{tpu_custom_call.1} parent=1 // pred_check_branch
      %11 = sbr.rel (0) target = $region5
    $region4: #{tpu_custom_call.1} parent=1 // pred_region
      %13 = vsyncadd [#allocation5], 0
      %s15 = sshll.u32 %s0, 4
      %s16 = int_to_ptr.hbm [resolvable:$true] %s15
      %18 = dma.hbm_to_smem %s16, 16, [#allocation2], [#allocation5]
    $region5: #{tpu_custom_call.1} parent=1 // pred_fallthru
      _
    // Predicated region
    $region6: #{tpu_custom_call.1} parent=1 // pred_check
      _
    $region7: #{tpu_custom_call.1} parent=1 // pred_check_branch
      %20 = sbr.rel (0) target = $region9
    $region8: #{tpu_custom_call.1} parent=1 // pred_region
      %22 = vsyncadd [#allocation3], 0
      %s23 = sshll.u32 %s1, 4
      %s24 = int_to_ptr.hbm [resolvable:$true] %s23
      %s25 = sshll.u32 [#allocation6], 4
      %s26 = int_to_ptr.vmem [resolvable:$true] %s25
      %31 = dma.hbm_to_vmem [thread:$0]  %s24, 384, %s26, [#allocation3], 128, 128, 8
    $region9: #{tpu_custom_call.1} parent=1 // pred_fallthru
      _
    // Predicated region
    $region10: #{tpu_custom_call.1} parent=1 // pred_check
      _
    $region11: #{tpu_custom_call.1} parent=1 // pred_check_branch
      %33 = sbr.rel (0) target = $region13
    $region12: #{tpu_custom_call.1} parent=1 // pred_region
      %35 = dma.done [#allocation5], 16
    $region13: #{tpu_custom_call.1} parent=1 // pred_fallthru
      _
    // Predicated region
    $region14: #{tpu_custom_call.1} parent=1 // pred_check
      _
    $region15: #{tpu_custom_call.1} parent=1 // pred_check_branch
      %37 = sbr.rel (0) target = $region17
    $region16: #{tpu_custom_call.1} parent=1 // pred_region
      %39 = dma.done [#allocation3], 384
    $region17: #{tpu_custom_call.1} parent=1 // pred_fallthru
      _
    %40 = sfence
    %v41 = vld [vmem:[#allocation6] sm:$0xff]
    %s42 = scalar_lea.vmem [#allocation6], 8
    %v43 = vld [vmem:[%s42] sm:$0xff]
    %s44 = scalar_lea.vmem [#allocation6], 16
    %v45 = vld [vmem:[%s44] sm:$0xff]
    %s46 = sld [smem:[#allocation2]]
    %s47 = sld [smem:[#allocation2 + $0x1]]
    %v48 = vstv %s47
    %v49 = vmul.f32 %v41, %v48
    %v50 = vstv %s46
    %v51 = vadd.f32 %v50, %v49
    %s52 = sld [smem:[#allocation2 + $0x2]]
    %s53 = sld [smem:[#allocation2 + $0x3]]
    %v54 = vstv %s53
    %v55 = vmul.f32 %v43, %v54
    %v56 = vstv %s52
    %v57 = vadd.f32 %v56, %v55
    %s58 = sld [smem:[#allocation2 + $0x4]]
    %v59 = vstv %s58
    %v60 = vmul.f32 %v45, %v59
    %v61 = vadd.f32 %v57, %v60
    %s62 = sld [smem:[#allocation2 + $0x5]]
    %v63 = vand.u32 2147483647, %v51
    %vm64 = vcmp.le.f32.partialorder %v63, 0.7853982
    %vm65 = vcmp.lt.s32.totalorder %v51, 0
    %v66 = vand.u32 %v51, 2139095040
    %v67 = vshrl.u32 %v66, 23
    %v68 = vsub.s32 %v67, 127
    %v69 = vand.u32 2147483647, %v51
    %v70 = vand.u32 %v69, 8388607
    %v71 = vor.u32 %v70, 8388608
    %v72 = vsub.s32 0, %v71
    %v73 = vadd.s32 %v68, 1
    %vm74 = vcmp.gt.s32.totalorder %v73, 0
    %v75 = vsel %vm74, %v73, 0
    %v76 = vshrl.u32 %v75, 5
    %v77 = vand.u32 %v75, 31
    %v78 = vsub.s32 32, %v77
    %v79 = vshrl.u32 683565275, %v78
    %v80 = vshll.u32 683565275, %v77
    %v81 = vshrl.u32 2475754826, %v78
    %v82 = vor.u32 %v80, %v81
    %v83 = vshll.u32 2475754826, %v77
    %v84 = vshrl.u32 2131351028, %v78
    %v85 = vor.u32 %v83, %v84
    %v86 = vshll.u32 2131351028, %v77
    %v87 = vshrl.u32 2102212464, %v78
    %v88 = vor.u32 %v86, %v87
    %v89 = vshll.u32 2102212464, %v77
    %v90 = vshrl.u32 920167782, %v78
    %v91 = vor.u32 %v89, %v90
    %v92 = vshll.u32 920167782, %v77
    %v93 = vshrl.u32 1326507024, %v78
    %v94 = vor.u32 %v92, %v93
    %vm95 = vcmp.lt.s32.totalorder %v76, 1
    %vm96 = vcmp.lt.s32.totalorder %v76, 2
    %vm97 = vcmp.lt.s32.totalorder %v76, 3
    %vm98 = vcmp.lt.s32.totalorder %v76, 4
    %v99 = vsel %vm95, %v79, %v82
    %v100 = vsel %vm98, %v88, 2102212464
    %v101 = vsel %vm97, %v85, %v100
    %v102 = vsel %vm96, %v99, %v101
    %v103 = vsel %vm95, %v82, %v85
    %v104 = vsel %vm98, %v91, 920167782
    %v105 = vsel %vm97, %v88, %v104
    %v106 = vsel %vm96, %v103, %v105
    %v107 = vsel %vm95, %v85, %v88
    %v108 = vsel %vm98, %v94, 1326507024
    %v109 = vsel %vm97, %v91, %v108
    %v110 = vsel %vm96, %v107, %v109
    %v111 = vshll.u32 %v71, 8
    %v112 = vand.u32 %v111, 65535
    %v113 = vshrl.u32 %v111, 16
    %v114 = vand.u32 %v110, 65535
    %v115 = vshrl.u32 %v110, 16
    %v116 = vmul.u32 %v112, %v114
    %v117 = vmul.u32 %v112, %v115
    %v118 = vmul.u32 %v113, %v114
    %v119 = vmul.u32 %v113, %v115
    %v120 = vshll.u32 %v117, 16
    %v121 = vshrl.u32 %v117, 16
    %v122 = vshll.u32 %v118, 16
    %v123 = vshrl.u32 %v118, 16
    %vm124 = vc.u32 %v116, %v120
    %v125 = vsel %vm124, 1, 0
    %v126 = vadd.s32 %v116, %v120
    %v127 = vadd.s32 %v119, %v125
    %vm128 = vc.u32 %v126, %v122
    %v129 = vsel %vm128, 1, 0
    %v130 = vadd.s32 %v126, %v122
    %v131 = vadd.s32 %v127, %v129
    %v132 = vadd.s32 %v131, %v121
    %v133 = vadd.s32 %v132, %v123
    %v134 = vand.u32 %v111, 65535
    %v135 = vshrl.u32 %v111, 16
    %v136 = vand.u32 %v106, 65535
    %v137 = vshrl.u32 %v106, 16
    %v138 = vmul.u32 %v134, %v136
    %v139 = vmul.u32 %v134, %v137
    %v140 = vmul.u32 %v135, %v136
    %v141 = vmul.u32 %v135, %v137
    %v142 = vshll.u32 %v139, 16
    %v143 = vshrl.u32 %v139, 16
    %v144 = vshll.u32 %v140, 16
    %v145 = vshrl.u32 %v140, 16
    %vm146 = vc.u32 %v138, %v142
    %v147 = vsel %vm146, 1, 0
    %v148 = vadd.s32 %v138, %v142
    %v149 = vadd.s32 %v141, %v147
    %vm150 = vc.u32 %v148, %v144
    %v151 = vsel %vm150, 1, 0
    %v152 = vadd.s32 %v148, %v144
    %v153 = vadd.s32 %v149, %v151
    %v154 = vadd.s32 %v153, %v143
    %v155 = vadd.s32 %v154, %v145
    %v156 = vmul.u32 %v111, %v102
    %v157 = vadd.s32 %v133, %v152
    %vm158 = vc.u32 %v133, %v152
    %v159 = vadd.s32 %v155, 1
    %v160 = vsel %vm158, %v159, %v155
    %v161 = vadd.s32 %v156, %v160
    %v162 = vadd.s32 %v161, 536870912
    %v163 = vshrl.u32 %v162, 30
    %v164 = vshll.u32 %v163, 30
    %v165 = vsub.s32 %v161, %v164
    %vm166 = vcmp.lt.s32.totalorder %v165, 0
    %v167 = vsub.s32 0, %v165
    %v168 = vsel %vm166, %v167, %v165
    %v169 = vclz %v168
    %v170 = vsub.s32 %v169, 2
    %vm171 = vcmp.gt.s32.totalorder 0, %v170
    %v172 = vsel %vm171, 0, %v170
    %v173 = vsub.s32 32, %v172
    %v174 = vshll.u32 %v165, %v172
    %v175 = vshrl.u32 %v157, %v173
    %v176 = vor.u32 %v174, %v175
    %v177 = vsub.s32 4294967266, %v172
    %v178 = vadd.s32 %v177, 127
    %v179 = vshll.u32 %v178, 23
    %v180 = vor.u32 4788187, %v179
    %v181 = vand.u32 2147483647, %v180
    %v183 = vcvt.s32.f32 %v176
    %v184 = vmul.f32 %v183, %v181
    %v185 = vxor.u32 %v184, 2147483648
    %v186 = vsel %vm65, %v185, %v184
    %v187 = vsub.s32 4, %v163
    %v188 = vsel %vm65, %v187, %v163
    %v189 = vsel %vm64, %v51, %v186
    %v190 = vsel %vm64, 0, %v188
    %v191 = vmul.f32 %v189, %v189
    %v192 = vmul.f32 %v191, -0.001358992
    %v193 = vadd.f32 %v192, 0.041655596
    %v194 = vmul.f32 %v191, %v193
    %v195 = vadd.f32 %v194, -0.4999988
    %v196 = vmul.f32 %v191, %v195
    %v197 = vadd.f32 1.0, %v196
    %v198 = vmul.f32 %v189, %v189
    %v199 = vmul.f32 %v198, -0.00019511016
    %v200 = vadd.f32 %v199, 0.008332121
    %v201 = vmul.f32 %v198, %v200
    %v202 = vadd.f32 %v201, -0.16666654
    %v203 = vmul.f32 %v198, %v202
    %v204 = vadd.f32 %v203, 1.0
    %v205 = vmul.f32 %v204, %v189
    %vm206 = vweird.f32 %v51
    %v207 = vand.u32 %v190, 3
    %vm208 = vcmp.lt.s32.totalorder %v207, 2
    %vm209 = vcmp.eq.s32.totalorder %v207, 0
    %v210 = vxor.u32 %v205, 2147483648
    %v211 = vsel %vm209, %v197, %v210
    %vm212 = vcmp.eq.s32.totalorder %v207, 2
    %v213 = vxor.u32 %v197, 2147483648
    %v214 = vsel %vm212, %v213, %v205
    %v215 = vsel %vm208, %v211, %v214
    %v216 = vsel %vm206, nan, %v215
    %v217 = vstv %s62
    %v218 = vmul.f32 %v217, %v216
    %v219 = vadd.f32 %v218, 0.5
    %s220 = sld [smem:[#allocation2 + $0x6]]
    %v221 = vand.u32 2147483647, %v51
    %vm222 = vcmp.le.f32.partialorder %v221, 0.7853982
    %vm223 = vcmp.lt.s32.totalorder %v51, 0
    %v224 = vand.u32 %v51, 2139095040
    %v225 = vshrl.u32 %v224, 23
    %v226 = vsub.s32 %v225, 127
    %v227 = vand.u32 2147483647, %v51
    %v228 = vand.u32 %v227, 8388607
    %v229 = vor.u32 %v228, 8388608
    %v230 = vsub.s32 0, %v229
    %v231 = vadd.s32 %v226, 1
    %vm232 = vcmp.gt.s32.totalorder %v231, 0
    %v233 = vsel %vm232, %v231, 0
    %v234 = vshrl.u32 %v233, 5
    %v235 = vand.u32 %v233, 31
    %v236 = vsub.s32 32, %v235
    %v237 = vshrl.u32 683565275, %v236
    %v238 = vshll.u32 683565275, %v235
    %v239 = vshrl.u32 2475754826, %v236
    %v240 = vor.u32 %v238, %v239
    %v241 = vshll.u32 2475754826, %v235
    %v242 = vshrl.u32 2131351028, %v236
    %v243 = vor.u32 %v241, %v242
    %v244 = vshll.u32 2131351028, %v235
    %v245 = vshrl.u32 2102212464, %v236
    %v246 = vor.u32 %v244, %v245
    %v247 = vshll.u32 2102212464, %v235
    %v248 = vshrl.u32 920167782, %v236
    %v249 = vor.u32 %v247, %v248
    %v250 = vshll.u32 920167782, %v235
    %v251 = vshrl.u32 1326507024, %v236
    %v252 = vor.u32 %v250, %v251
    %vm253 = vcmp.lt.s32.totalorder %v234, 1
    %vm254 = vcmp.lt.s32.totalorder %v234, 2
    %vm255 = vcmp.lt.s32.totalorder %v234, 3
    %vm256 = vcmp.lt.s32.totalorder %v234, 4
    %v257 = vsel %vm253, %v237, %v240
    %v258 = vsel %vm256, %v246, 2102212464
    %v259 = vsel %vm255, %v243, %v258
    %v260 = vsel %vm254, %v257, %v259
    %v261 = vsel %vm253, %v240, %v243
    %v262 = vsel %vm256, %v249, 920167782
    %v263 = vsel %vm255, %v246, %v262
    %v264 = vsel %vm254, %v261, %v263
    %v265 = vsel %vm253, %v243, %v246
    %v266 = vsel %vm256, %v252, 1326507024
    %v267 = vsel %vm255, %v249, %v266
    %v268 = vsel %vm254, %v265, %v267
    %v269 = vshll.u32 %v229, 8
    %v270 = vand.u32 %v269, 65535
    %v271 = vshrl.u32 %v269, 16
    %v272 = vand.u32 %v268, 65535
    %v273 = vshrl.u32 %v268, 16
    %v274 = vmul.u32 %v270, %v272
    %v275 = vmul.u32 %v270, %v273
    %v276 = vmul.u32 %v271, %v272
    %v277 = vmul.u32 %v271, %v273
    %v278 = vshll.u32 %v275, 16
    %v279 = vshrl.u32 %v275, 16
    %v280 = vshll.u32 %v276, 16
    %v281 = vshrl.u32 %v276, 16
    %vm282 = vc.u32 %v274, %v278
    %v283 = vsel %vm282, 1, 0
    %v284 = vadd.s32 %v274, %v278
    %v285 = vadd.s32 %v277, %v283
    %vm286 = vc.u32 %v284, %v280
    %v287 = vsel %vm286, 1, 0
    %v288 = vadd.s32 %v284, %v280
    %v289 = vadd.s32 %v285, %v287
    %v290 = vadd.s32 %v289, %v279
    %v291 = vadd.s32 %v290, %v281
    %v292 = vand.u32 %v269, 65535
    %v293 = vshrl.u32 %v269, 16
    %v294 = vand.u32 %v264, 65535
    %v295 = vshrl.u32 %v264, 16
    %v296 = vmul.u32 %v292, %v294
    %v297 = vmul.u32 %v292, %v295
    %v298 = vmul.u32 %v293, %v294
    %v299 = vmul.u32 %v293, %v295
    %v300 = vshll.u32 %v297, 16
    %v301 = vshrl.u32 %v297, 16
    %v302 = vshll.u32 %v298, 16
    %v303 = vshrl.u32 %v298, 16
    %vm304 = vc.u32 %v296, %v300
    %v305 = vsel %vm304, 1, 0
    %v306 = vadd.s32 %v296, %v300
    %v307 = vadd.s32 %v299, %v305
    %vm308 = vc.u32 %v306, %v302
    %v309 = vsel %vm308, 1, 0
    %v310 = vadd.s32 %v306, %v302
    %v311 = vadd.s32 %v307, %v309
    %v312 = vadd.s32 %v311, %v301
    %v313 = vadd.s32 %v312, %v303
    %v314 = vmul.u32 %v269, %v260
    %v315 = vadd.s32 %v291, %v310
    %vm316 = vc.u32 %v291, %v310
    %v317 = vadd.s32 %v313, 1
    %v318 = vsel %vm316, %v317, %v313
    %v319 = vadd.s32 %v314, %v318
    %v320 = vadd.s32 %v319, 536870912
    %v321 = vshrl.u32 %v320, 30
    %v322 = vshll.u32 %v321, 30
    %v323 = vsub.s32 %v319, %v322
    %vm324 = vcmp.lt.s32.totalorder %v323, 0
    %v325 = vsub.s32 0, %v323
    %v326 = vsel %vm324, %v325, %v323
    %v327 = vclz %v326
    %v328 = vsub.s32 %v327, 2
    %vm329 = vcmp.gt.s32.totalorder 0, %v328
    %v330 = vsel %vm329, 0, %v328
    %v331 = vsub.s32 32, %v330
    %v332 = vshll.u32 %v323, %v330
    %v333 = vshrl.u32 %v315, %v331
    %v334 = vor.u32 %v332, %v333
    %v335 = vsub.s32 4294967266, %v330
    %v336 = vadd.s32 %v335, 127
    %v337 = vshll.u32 %v336, 23
    %v338 = vor.u32 4788187, %v337
    %v339 = vand.u32 2147483647, %v338
    %v341 = vcvt.s32.f32 %v334
    %v342 = vmul.f32 %v341, %v339
    %v343 = vxor.u32 %v342, 2147483648
    %v344 = vsel %vm223, %v343, %v342
    %v345 = vsub.s32 4, %v321
    %v346 = vsel %vm223, %v345, %v321
    %v347 = vsel %vm222, %v51, %v344
    %v348 = vsel %vm222, 0, %v346
    %v349 = vmul.f32 %v347, %v347
    %v350 = vmul.f32 %v349, -0.001358992
    %v351 = vadd.f32 %v350, 0.041655596
    %v352 = vmul.f32 %v349, %v351
    %v353 = vadd.f32 %v352, -0.4999988
    %v354 = vmul.f32 %v349, %v353
    %v355 = vadd.f32 1.0, %v354
    %v356 = vmul.f32 %v347, %v347
    %v357 = vmul.f32 %v356, -0.00019511016
    %v358 = vadd.f32 %v357, 0.008332121
    %v359 = vmul.f32 %v356, %v358
    %v360 = vadd.f32 %v359, -0.16666654
    %v361 = vmul.f32 %v356, %v360
    %v362 = vadd.f32 %v361, 1.0
    %v363 = vmul.f32 %v362, %v347
    %vm364 = vweird.f32 %v51
    %v365 = vadd.s32 %v348, 3
    %v366 = vand.u32 %v365, 3
    %vm367 = vcmp.lt.s32.totalorder %v366, 2
    %vm368 = vcmp.eq.s32.totalorder %v366, 0
    %v369 = vxor.u32 %v363, 2147483648
    %v370 = vsel %vm368, %v355, %v369
    %vm371 = vcmp.eq.s32.totalorder %v366, 2
    %v372 = vxor.u32 %v355, 2147483648
    %v373 = vsel %vm371, %v372, %v363
    %v374 = vsel %vm367, %v370, %v373
    %v375 = vsel %vm364, nan, %v374
    %v376 = vand.u32 2147483647, %v61
    %vm377 = vcmp.le.f32.partialorder %v376, 0.7853982
    %vm378 = vcmp.lt.s32.totalorder %v61, 0
    %v379 = vand.u32 %v61, 2139095040
    %v380 = vshrl.u32 %v379, 23
    %v381 = vsub.s32 %v380, 127
    %v382 = vand.u32 2147483647, %v61
    %v383 = vand.u32 %v382, 8388607
    %v384 = vor.u32 %v383, 8388608
    %v385 = vsub.s32 0, %v384
    %v386 = vadd.s32 %v381, 1
    %vm387 = vcmp.gt.s32.totalorder %v386, 0
    %v388 = vsel %vm387, %v386, 0
    %v389 = vshrl.u32 %v388, 5
    %v390 = vand.u32 %v388, 31
    %v391 = vsub.s32 32, %v390
    %v392 = vshrl.u32 683565275, %v391
    %v393 = vshll.u32 683565275, %v390
    %v394 = vshrl.u32 2475754826, %v391
    %v395 = vor.u32 %v393, %v394
    %v396 = vshll.u32 2475754826, %v390
    %v397 = vshrl.u32 2131351028, %v391
    %v398 = vor.u32 %v396, %v397
    %v399 = vshll.u32 2131351028, %v390
    %v400 = vshrl.u32 2102212464, %v391
    %v401 = vor.u32 %v399, %v400
    %v402 = vshll.u32 2102212464, %v390
    %v403 = vshrl.u32 920167782, %v391
    %v404 = vor.u32 %v402, %v403
    %v405 = vshll.u32 920167782, %v390
    %v406 = vshrl.u32 1326507024, %v391
    %v407 = vor.u32 %v405, %v406
    %vm408 = vcmp.lt.s32.totalorder %v389, 1
    %vm409 = vcmp.lt.s32.totalorder %v389, 2
    %vm410 = vcmp.lt.s32.totalorder %v389, 3
    %vm411 = vcmp.lt.s32.totalorder %v389, 4
    %v412 = vsel %vm408, %v392, %v395
    %v413 = vsel %vm411, %v401, 2102212464
    %v414 = vsel %vm410, %v398, %v413
    %v415 = vsel %vm409, %v412, %v414
    %v416 = vsel %vm408, %v395, %v398
    %v417 = vsel %vm411, %v404, 920167782
    %v418 = vsel %vm410, %v401, %v417
    %v419 = vsel %vm409, %v416, %v418
    %v420 = vsel %vm408, %v398, %v401
    %v421 = vsel %vm411, %v407, 1326507024
    %v422 = vsel %vm410, %v404, %v421
    %v423 = vsel %vm409, %v420, %v422
    %v424 = vshll.u32 %v384, 8
    %v425 = vand.u32 %v424, 65535
    %v426 = vshrl.u32 %v424, 16
    %v427 = vand.u32 %v423, 65535
    %v428 = vshrl.u32 %v423, 16
    %v429 = vmul.u32 %v425, %v427
    %v430 = vmul.u32 %v425, %v428
    %v431 = vmul.u32 %v426, %v427
    %v432 = vmul.u32 %v426, %v428
    %v433 = vshll.u32 %v430, 16
    %v434 = vshrl.u32 %v430, 16
    %v435 = vshll.u32 %v431, 16
    %v436 = vshrl.u32 %v431, 16
    %vm437 = vc.u32 %v429, %v433
    %v438 = vsel %vm437, 1, 0
    %v439 = vadd.s32 %v429, %v433
    %v440 = vadd.s32 %v432, %v438
    %vm441 = vc.u32 %v439, %v435
    %v442 = vsel %vm441, 1, 0
    %v443 = vadd.s32 %v439, %v435
    %v444 = vadd.s32 %v440, %v442
    %v445 = vadd.s32 %v444, %v434
    %v446 = vadd.s32 %v445, %v436
    %v447 = vand.u32 %v424, 65535
    %v448 = vshrl.u32 %v424, 16
    %v449 = vand.u32 %v419, 65535
    %v450 = vshrl.u32 %v419, 16
    %v451 = vmul.u32 %v447, %v449
    %v452 = vmul.u32 %v447, %v450
    %v453 = vmul.u32 %v448, %v449
    %v454 = vmul.u32 %v448, %v450
    %v455 = vshll.u32 %v452, 16
    %v456 = vshrl.u32 %v452, 16
    %v457 = vshll.u32 %v453, 16
    %v458 = vshrl.u32 %v453, 16
    %vm459 = vc.u32 %v451, %v455
    %v460 = vsel %vm459, 1, 0
    %v461 = vadd.s32 %v451, %v455
    %v462 = vadd.s32 %v454, %v460
    %vm463 = vc.u32 %v461, %v457
    %v464 = vsel %vm463, 1, 0
    %v465 = vadd.s32 %v461, %v457
    %v466 = vadd.s32 %v462, %v464
    %v467 = vadd.s32 %v466, %v456
    %v468 = vadd.s32 %v467, %v458
    %v469 = vmul.u32 %v424, %v415
    %v470 = vadd.s32 %v446, %v465
    %vm471 = vc.u32 %v446, %v465
    %v472 = vadd.s32 %v468, 1
    %v473 = vsel %vm471, %v472, %v468
    %v474 = vadd.s32 %v469, %v473
    %v475 = vadd.s32 %v474, 536870912
    %v476 = vshrl.u32 %v475, 30
    %v477 = vshll.u32 %v476, 30
    %v478 = vsub.s32 %v474, %v477
    %vm479 = vcmp.lt.s32.totalorder %v478, 0
    %v480 = vsub.s32 0, %v478
    %v481 = vsel %vm479, %v480, %v478
    %v482 = vclz %v481
    %v483 = vsub.s32 %v482, 2
    %vm484 = vcmp.gt.s32.totalorder 0, %v483
    %v485 = vsel %vm484, 0, %v483
    %v486 = vsub.s32 32, %v485
    %v487 = vshll.u32 %v478, %v485
    %v488 = vshrl.u32 %v470, %v486
    %v489 = vor.u32 %v487, %v488
    %v490 = vsub.s32 4294967266, %v485
    %v491 = vadd.s32 %v490, 127
    %v492 = vshll.u32 %v491, 23
    %v493 = vor.u32 4788187, %v492
    %v494 = vand.u32 2147483647, %v493
    %v496 = vcvt.s32.f32 %v489
    %v497 = vmul.f32 %v496, %v494
    %v498 = vxor.u32 %v497, 2147483648
    %v499 = vsel %vm378, %v498, %v497
    %v500 = vsub.s32 4, %v476
    %v501 = vsel %vm378, %v500, %v476
    %v502 = vsel %vm377, %v61, %v499
    %v503 = vsel %vm377, 0, %v501
    %v504 = vmul.f32 %v502, %v502
    %v505 = vmul.f32 %v504, -0.001358992
    %v506 = vadd.f32 %v505, 0.041655596
    %v507 = vmul.f32 %v504, %v506
    %v508 = vadd.f32 %v507, -0.4999988
    %v509 = vmul.f32 %v504, %v508
    %v510 = vadd.f32 1.0, %v509
    %v511 = vmul.f32 %v502, %v502
    %v512 = vmul.f32 %v511, -0.00019511016
    %v513 = vadd.f32 %v512, 0.008332121
    %v514 = vmul.f32 %v511, %v513
    %v515 = vadd.f32 %v514, -0.16666654
    %v516 = vmul.f32 %v511, %v515
    %v517 = vadd.f32 %v516, 1.0
    %v518 = vmul.f32 %v517, %v502
    %vm519 = vweird.f32 %v61
    %v520 = vand.u32 %v503, 3
    %vm521 = vcmp.lt.s32.totalorder %v520, 2
    %vm522 = vcmp.eq.s32.totalorder %v520, 0
    %v523 = vxor.u32 %v518, 2147483648
    %v524 = vsel %vm522, %v510, %v523
    %vm525 = vcmp.eq.s32.totalorder %v520, 2
    %v526 = vxor.u32 %v510, 2147483648
    %v527 = vsel %vm525, %v526, %v518
    %v528 = vsel %vm521, %v524, %v527
    %v529 = vsel %vm519, nan, %v528
    %v530 = vmul.f32 %v375, %v529
    %v531 = vstv %s220
    %v532 = vmul.f32 %v531, %v530
    %v533 = vsub.f32 %v219, %v532
    %534 = vst [vmem:[#allocation7] sm:$0xff] %v533
    // Predicated region
    $region18: #{tpu_custom_call.1} parent=1 // pred_check
      _
    $region19: #{tpu_custom_call.1} parent=1 // pred_check_branch
      %536 = sbr.rel (0) target = $region21
    $region20: #{tpu_custom_call.1} parent=1 // pred_region
      %538 = vsyncadd [#allocation4], 0
      %s540 = sshll.u32 [#allocation7], 4
      %s541 = int_to_ptr.vmem [resolvable:$true] %s540
      %s542 = sshll.u32 %s2, 4
      %s543 = int_to_ptr.hbm [resolvable:$true] %s542
      %545 = dma.vmem_to_hbm [thread:$0]  %s541, 128, %s543, [#allocation4]
    $region21: #{tpu_custom_call.1} parent=1 // pred_fallthru
      _
    // Predicated region
    $region22: #{tpu_custom_call.1} parent=1 // pred_check
      _
    $region23: #{tpu_custom_call.1} parent=1 // pred_check_branch
      %547 = sbr.rel (0) target = $region25
    $region24: #{tpu_custom_call.1} parent=1 // pred_region
      %549 = dma.done [#allocation4], 128
    $region25: #{tpu_custom_call.1} parent=1 // pred_fallthru
      _
    %550 = vsyncpa [#allocation3], 1
    %551 = vsyncpa [#allocation4], 1
    %552 = vsyncpa [#allocation5], 1

</llo_original>
